<compile_context>
chip_gen: v7x
topology: tpu7x:2x2x1
jax: 0.10.0
libtpu: 0.0.40
codegen_flags: <defaults>
</compile_context>

<pallas_src>
import functools

import jax
import jax.numpy as jnp
from jax.experimental import pallas as pl
from jax.experimental.pallas import tpu as pltpu


def _round_up(x, m):
    return ((x + m - 1) // m) * m


def _pick_tile(dim, candidates, prefer_multi=False):
    """Largest candidate tile dividing `dim`; optionally prefer >=2 tiles."""
    divisors = [c for c in candidates if dim % c == 0]
    if prefer_multi:
        multi = [c for c in divisors if dim // c >= 2]
        if multi:
            return multi[0]
    return divisors[0] if divisors else dim


# ---------------------------------------------------------------------------
# Kernel
# ---------------------------------------------------------------------------
def dynq_linear_kernel(scale_ref, x_ref, wq_ref, b_ref, o_ref):
    """One (n-tile, k-tile) grid step.

    scale_ref : SMEM f32[1]            act_scale * weight_scale
    x_ref     : VMEM bf16[B_pad, tk]   re-centered quantized activations (exact ints)
    wq_ref    : VMEM i8 [tk, tn]       per-tensor symmetric int8 weights
    b_ref     : VMEM f32[1, tn]        bias (N tile)
    o_ref     : VMEM f32[B_pad, tn]    output tile; doubles as the K accumulator
    """
    k = pl.program_id(1)

    @pl.when(k == 0)
    def _():
        o_ref[...] = jnp.zeros_like(o_ref)

    # bf16 x bf16 -> f32 accumulate on the MXU (full rate on v5e/v6e/v7x; both
    # operands are integers with |v| <= 127, so the products are exact).
    o_ref[...] += jnp.dot(x_ref[...], wq_ref[...].astype(jnp.bfloat16),
                          preferred_element_type=jnp.float32)

    @pl.when(k == pl.num_programs(1) - 1)
    def _():
        o_ref[...] = o_ref[...] * scale_ref[0] + b_ref[...]


# ---------------------------------------------------------------------------
# Init-time glue (run ONCE per module, outside the per-call path)
# ---------------------------------------------------------------------------
def prepare_dynq_linear(weight, bias):
    """Per-tensor symmetric int8 weight quantization + TPU layout/padding.

    weight: [out_features, in_features] f32  (nn.Linear layout)
    bias  : [out_features] f32
    Returns (w_p int8 [K_pad, N_pad], b_p f32 [1, N_pad], w_scale f32 scalar).
    """
    out_features, in_features = weight.shape
    weight = weight.astype(jnp.float32)
    qmax = 127.0
    max_abs = jnp.maximum(jnp.max(jnp.abs(weight)), 1e-8)
    w_scale = (max_abs / qmax).astype(jnp.float32)
    w_q = jnp.clip(jnp.round(weight / w_scale), -128.0, 127.0).astype(jnp.int8)

    K_pad = _round_up(in_features, 128)
    N_pad = _round_up(out_features, 128)
    w_p = jnp.zeros((K_pad, N_pad), jnp.int8).at[:in_features, :out_features].set(w_q.T)
    b_p = jnp.zeros((1, N_pad), jnp.float32).at[0, :out_features].set(
        bias.astype(jnp.float32))
    return w_p, b_p, w_scale


# ---------------------------------------------------------------------------
# Per-call wrapper
# ---------------------------------------------------------------------------
@functools.partial(jax.jit, static_argnames=("n_out",))
def dynq_linear(x, w_p, b_p, w_scale, *, n_out):
    """x: [B, K] f32, w_p: [K_pad, N_pad] int8 (pre-padded), b_p: [1, N_pad] f32."""
    B, K = x.shape
    K_pad, N_pad = w_p.shape

    # --- dynamic per-tensor activation quant params (whole tensor) ---
    qmin, qmax = 0.0, 127.0                       # quint8 with reduce_range
    x = x.astype(jnp.float32)
    x_min = jnp.minimum(jnp.min(x), 0.0)          # range must include zero
    x_max = jnp.maximum(jnp.max(x), 0.0)
    scale = (x_max - x_min) / (qmax - qmin)
    scale = jnp.where(scale <= 0.0, jnp.float32(0.1), scale)   # degenerate range
    zp = jnp.clip(jnp.round(qmin - x_min / scale), qmin, qmax)

    # Quantize + re-center ONCE (reused by every N tile); integers in
    # [-127, 127] are exact in bf16, and bf16 halves activation HBM traffic.
    q_x = jnp.clip(jnp.round(x * (1.0 / scale)) + zp, qmin, qmax)
    xq_c = (q_x - zp).astype(jnp.bfloat16)

    B_pad = _round_up(max(B, 8), 8)
    x_p = jnp.zeros((B_pad, K_pad), jnp.bfloat16).at[:B, :K].set(xq_c)
    out_scale = (scale * w_scale.astype(jnp.float32)).reshape(1)

    # --- tile selection (VMEM budget: weight dbuf <= 2 MiB, fits all gens) ---
    tn = _pick_tile(N_pad, (512, 256, 128), prefer_multi=True)
    tk = _pick_tile(K_pad, (2048, 1024, 512, 256, 128))
    grid = (N_pad // tn, K_pad // tk)
    grid_n = grid[0]

    out = pl.pallas_call(
        dynq_linear_kernel,
        out_shape=jax.ShapeDtypeStruct((B_pad, N_pad), jnp.float32),
        grid_spec=pltpu.PrefetchScalarGridSpec(
            num_scalar_prefetch=0,
            grid=grid,
            in_specs=[
                pl.BlockSpec(memory_space=pltpu.MemorySpace.SMEM),   # out scale
                pl.BlockSpec((B_pad, tk), lambda j, k: (0, k)),      # bf16 activations
                pl.BlockSpec((tk, tn), lambda j, k: (k, j)),         # int8 weights
                pl.BlockSpec((1, tn), lambda j, k: (0, j)),          # bias
            ],
            out_specs=pl.BlockSpec((B_pad, tn), lambda j, k: (0, j)),
        ),
        compiler_params=pltpu.CompilerParams(
            dimension_semantics=("parallel", "arbitrary"),           # N parallel, K reduction
        ),
        cost_estimate=pl.CostEstimate(
            flops=2 * B_pad * K_pad * N_pad,
            transcendentals=0,
            bytes_accessed=(x_p.size * 2 * grid_n      # x re-read per N tile (bf16)
                            + w_p.size * 1             # int8 weights, read once
                            + b_p.size * 4
                            + B_pad * N_pad * 4),
        ),
    )(out_scale, x_p, w_p, b_p)

    return out[:B, :n_out]


# ---------------------------------------------------------------------------
# Pure-JAX reference of the same dynamic-quant math
# ---------------------------------------------------------------------------
def _reference(x, w_p, b_p, w_scale, n_out):
    K = x.shape[1]
    qmin, qmax = 0.0, 127.0
    x = x.astype(jnp.float32)
    x_min = jnp.minimum(jnp.min(x), 0.0)
    x_max = jnp.maximum(jnp.max(x), 0.0)
    s = (x_max - x_min) / (qmax - qmin)
    s = jnp.where(s <= 0.0, jnp.float32(0.1), s)
    zp = jnp.clip(jnp.round(qmin - x_min / s), qmin, qmax)
    qx = jnp.clip(jnp.round(x * (1.0 / s)) + zp, qmin, qmax)
    x_dq = (qx - zp) * s
    w_dq = w_p[:K, :n_out].astype(jnp.float32) * w_scale
    return x_dq @ w_dq + b_p[0, :n_out]


if __name__ == "__main__":
    key = jax.random.PRNGKey(0)

    # ---- test 1: small shapes matching the module's test (single-tile grid) ----
    in_features, out_features, batch = 64, 32, 4
    k_w, k_b, k_x, key = jax.random.split(key, 4)
    bound = 1.0 / (in_features ** 0.5)
    weight = jax.random.uniform(k_w, (out_features, in_features),
                                minval=-bound, maxval=bound, dtype=jnp.float32)
    bias = jax.random.uniform(k_b, (out_features,),
                              minval=-bound, maxval=bound, dtype=jnp.float32)
    x = jax.random.normal(k_x, (batch, in_features), dtype=jnp.float32)

    w_p, b_p, w_scale = prepare_dynq_linear(weight, bias)       # init-time, once
    out = jax.block_until_ready(dynq_linear(x, w_p, b_p, w_scale, n_out=out_features))
    ref = _reference(x, w_p, b_p, w_scale, out_features)
    assert out.shape == (batch, out_features) and out.dtype == jnp.float32
    assert jnp.allclose(out, ref, atol=1e-4, rtol=1e-4), "mismatch vs reference (small)"

    # ---- test 2: exercises multi-tile N grid + multi-step K accumulation ----
    in_features, out_features, batch = 1280, 384, 8
    k_w, k_b, k_x, key = jax.random.split(key, 4)
    bound = 1.0 / (in_features ** 0.5)
    weight = jax.random.uniform(k_w, (out_features, in_features),
                                minval=-bound, maxval=bound, dtype=jnp.float32)
    bias = jax.random.uniform(k_b, (out_features,),
                              minval=-bound, maxval=bound, dtype=jnp.float32)
    x = jax.random.normal(k_x, (batch, in_features), dtype=jnp.float32)

    w_p, b_p, w_scale = prepare_dynq_linear(weight, bias)
    out = jax.block_until_ready(dynq_linear(x, w_p, b_p, w_scale, n_out=out_features))
    ref = _reference(x, w_p, b_p, w_scale, out_features)
    assert out.shape == (batch, out_features)
    assert jnp.allclose(out, ref, atol=1e-3, rtol=1e-3), "mismatch vs reference (tiled)"

    print("KERNEL_OK")
</pallas_src>

<mosaic_0001>
module attributes {stable_mosaic.version = 11 : i64} {
  func.func @dynq_linear_kernel(%arg0: i32, %arg1: i32, %arg2: memref<1xf32, #tpu.memory_space<smem>>, %arg3: memref<8x128xbf16, #tpu.memory_space<vmem>>, %arg4: memref<128x128xi8, #tpu.memory_space<vmem>>, %arg5: memref<1x128xf32, #tpu.memory_space<vmem>>, %arg6: memref<8x128xf32, #tpu.memory_space<vmem>>) attributes {dimension_semantics = [#tpu.dimension_semantics<parallel>, #tpu.dimension_semantics<arbitrary>], iteration_bounds = array<i64: 1, 1>, scalar_prefetch = 0 : i64, scratch_operands = 0 : i64, tpu.core_type = #tpu.core_type<tc>, window_params = [{transform_indices = @transform_0, window_bounds = array<i64: 1>}, {transform_indices = @transform_1, window_bounds = array<i64: 8, 128>}, {transform_indices = @transform_2, window_bounds = array<i64: 128, 128>}, {transform_indices = @transform_3, window_bounds = array<i64: 1, 128>}, {transform_indices = @transform_4, window_bounds = array<i64: 8, 128>}]} {
    %c0_i32 = arith.constant 0 : i32
    %0 = arith.cmpi eq, %arg1, %c0_i32 : i32
    %1 = arith.extui %0 : i1 to i32
    %c0_i32_0 = arith.constant 0 : i32
    %2 = arith.cmpi ne, %1, %c0_i32_0 : i32
    scf.if %2 {
      %cst_10 = arith.constant 0.000000e+00 : f32
      %13 = vector.broadcast %cst_10 : f32 to vector<8x128xf32>
      %c0_11 = arith.constant 0 : index
      %c0_12 = arith.constant 0 : index
      %14 = vector.load %arg6[%c0_11, %c0_12] : memref<8x128xf32, #tpu.memory_space<vmem>>, vector<8x128xf32>
      tpu.vector_store %arg6[%c0_11, %c0_12], %13 {strides = array<i32>} : memref<8x128xf32, #tpu.memory_space<vmem>>, vector<8x128xf32>,
    } else {
    }
    %c0 = arith.constant 0 : index
    %c0_1 = arith.constant 0 : index
    %3 = vector.load %arg6[%c0, %c0_1] : memref<8x128xf32, #tpu.memory_space<vmem>>, vector<8x128xf32>
    %c0_2 = arith.constant 0 : index
    %c0_3 = arith.constant 0 : index
    %4 = vector.load %arg3[%c0_2, %c0_3] : memref<8x128xbf16, #tpu.memory_space<vmem>>, vector<8x128xbf16>
    %c0_4 = arith.constant 0 : index
    %c0_5 = arith.constant 0 : index
    %5 = vector.load %arg4[%c0_4, %c0_5] : memref<128x128xi8, #tpu.memory_space<vmem>>, vector<128x128xi8>
    %6 = arith.sitofp %5 : vector<128x128xi8> to vector<128x128xbf16>
    %cst = arith.constant dense<0.000000e+00> : vector<8x128xf32>
    %7 = tpu.matmul %4, %6, %cst {dimension_numbers = #tpu.dot_dimension_numbers<[1], [0], [0], [1], [0, 0, 1, 1], [], []>} : vector<8x128xbf16>, vector<128x128xbf16>, vector<8x128xf32> -> vector<8x128xf32>
    %8 = arith.addf %3, %7 : vector<8x128xf32>
    %c0_6 = arith.constant 0 : index
    %c0_7 = arith.constant 0 : index
    %9 = vector.load %arg6[%c0_6, %c0_7] : memref<8x128xf32, #tpu.memory_space<vmem>>, vector<8x128xf32>
    tpu.vector_store %arg6[%c0_6, %c0_7], %8 {strides = array<i32>} : memref<8x128xf32, #tpu.memory_space<vmem>>, vector<8x128xf32>,
    %c0_i32_8 = arith.constant 0 : i32
    %10 = arith.cmpi eq, %arg1, %c0_i32_8 : i32
    %11 = arith.extui %10 : i1 to i32
    %c0_i32_9 = arith.constant 0 : i32
    %12 = arith.cmpi ne, %11, %c0_i32_9 : i32
    scf.if %12 {
      %c0_10 = arith.constant 0 : index
      %c0_11 = arith.constant 0 : index
      %13 = vector.load %arg6[%c0_10, %c0_11] : memref<8x128xf32, #tpu.memory_space<vmem>>, vector<8x128xf32>
      %c0_12 = arith.constant 0 : index
      %14 = memref.load %arg2[%c0_12] : memref<1xf32, #tpu.memory_space<smem>>
      %15 = vector.broadcast %14 : f32 to vector<8x128xf32>
      %16 = arith.mulf %13, %15 : vector<8x128xf32>
      %c0_13 = arith.constant 0 : index
      %c0_14 = arith.constant 0 : index
      %17 = vector.load %arg5[%c0_13, %c0_14] : memref<1x128xf32, #tpu.memory_space<vmem>>, vector<1x128xf32>
      %18 = vector.broadcast %17 : vector<1x128xf32> to vector<8x128xf32>
      %19 = arith.addf %16, %18 : vector<8x128xf32>
      %c0_15 = arith.constant 0 : index
      %c0_16 = arith.constant 0 : index
      %20 = vector.load %arg6[%c0_15, %c0_16] : memref<8x128xf32, #tpu.memory_space<vmem>>, vector<8x128xf32>
      tpu.vector_store %arg6[%c0_15, %c0_16], %19 {strides = array<i32>} : memref<8x128xf32, #tpu.memory_space<vmem>>, vector<8x128xf32>,
    } else {
    }
    return
  }
  func.func @transform_0(%arg0: i32, %arg1: i32) -> i32 {
    %c0_i32 = arith.constant 0 : i32
    %c0_i32_0 = arith.constant 0 : i32
    return %c0_i32 : i32
  }
  func.func @transform_1(%arg0: i32, %arg1: i32) -> (i32, i32) {
    %c0_i32 = arith.constant 0 : i32
    %c0_i32_0 = arith.constant 0 : i32
    return %c0_i32, %arg1 : i32, i32
  }
  func.func @transform_2(%arg0: i32, %arg1: i32) -> (i32, i32) {
    %c0_i32 = arith.constant 0 : i32
    return %arg1, %arg0 : i32, i32
  }
  func.func @transform_3(%arg0: i32, %arg1: i32) -> (i32, i32) {
    %c0_i32 = arith.constant 0 : i32
    %c0_i32_0 = arith.constant 0 : i32
    return %c0_i32, %arg0 : i32, i32
  }
  func.func @transform_4(%arg0: i32, %arg1: i32) -> (i32, i32) {
    %c0_i32 = arith.constant 0 : i32
    %c0_i32_0 = arith.constant 0 : i32
    return %c0_i32, %arg0 : i32, i32
  }
}

</mosaic_0001>

<llo_original>
// kernel: dynq_linear.1
$region0: #{dynq_linear.1}
  #allocation0 [shape = 'u32[]', space=smem, size = 0x4, offset = 0x4, fixed_abs, tag = 'smem constant byte address 0x4 - core index']
  #allocation1 [shape = 'u32[144,128]{1,0:T(1,128)}', space=vmem, size = 0x12000, scoped, tag = 'internal scratch']
  #allocation2 [shape = 'f32[1]{0:T(128)S(6)}', space=smem, size = 0x200, scoped, tag = 'scoped memory for dynq_linear.1']
  %s0 = inlined_call_operand.<no memory space> [shape: f32[1], index: 0, kind: input, shape index: {}]
  %s1 = inlined_call_operand.vmem [shape: bf16[8,128], index: 1, kind: input, shape index: {}]
  %s2 = inlined_call_operand.vmem [shape: s8[128,128], index: 2, kind: input, shape index: {}]
  %s3 = inlined_call_operand.vmem [shape: f32[1,128], index: 3, kind: input, shape index: {}]
  %s4 = inlined_call_operand.vmem [shape: f32[8,128], index: 4, kind: output, shape index: {}]
  %s5 = sld [smem:[#allocation0]]
  $region34: #{dynq_linear.1} parent=0
    _
  %s7 = ssub.s32 1, %s5
  %s8 = scalar_select 0, %s7, %s5
  %9 = sst [smem:[#allocation2]] %s0
  // Predicated region
  $region2: #{dynq_linear.1} parent=0 // pred_check
    _
  $region3: #{dynq_linear.1} parent=0 // pred_check_branch
    %11 = sbr.rel (0) target = $region5
  $region4: #{dynq_linear.1} parent=0 // pred_region
    _
  $region5: #{dynq_linear.1} parent=0 // pred_fallthru
    _
  // Predicated region
  $region6: #{dynq_linear.1} parent=0 // pred_check
    _
  $region7: #{dynq_linear.1} parent=0 // pred_check_branch
    %13 = sbr.rel (0) target = $region9
  $region8: #{dynq_linear.1} parent=0 // pred_region
    _
  $region9: #{dynq_linear.1} parent=0 // pred_fallthru
    _
  // Predicated region
  $region10: #{dynq_linear.1} parent=0 // pred_check
    _
  $region11: #{dynq_linear.1} parent=0 // pred_check_branch
    %15 = sbr.rel (0) target = $region13
  $region12: #{dynq_linear.1} parent=0 // pred_region
    _
  $region13: #{dynq_linear.1} parent=0 // pred_fallthru
    _
  // Predicated region
  $region14: #{dynq_linear.1} parent=0 // pred_check
    _
  $region15: #{dynq_linear.1} parent=0 // pred_check_branch
    %17 = sbr.rel (0) target = $region17
  $region16: #{dynq_linear.1} parent=0 // pred_region
    _
  $region17: #{dynq_linear.1} parent=0 // pred_fallthru
    _
  %p19 = scmp.eq.s32.totalorder 0, 0
  // Predicated region
  $region18: #{dynq_linear.1} parent=0 // pred_check
    %p20 = pneg %p19
  $region19: #{dynq_linear.1} parent=0 // pred_check_branch
    %22 = sbr.rel (%p20) target = $region21
  $region20: #{dynq_linear.1} parent=0 // pred_region
    %23 = vst [vmem:[%s4] sm:$0xff] 0.0
  $region21: #{dynq_linear.1} parent=0 // pred_fallthru
    _
  %v24 = vld [vmem:[%s4] sm:$0xff]
  %v25 = vld [vmem:[%s1] sm:$0xf]
  %v26 = vld [vmem:[%s2] sm:$0xff]
  %v27 = vld [vmem:[%s2 + $0x8] sm:$0xff]
  %v28 = vld [vmem:[%s2 + $0x10] sm:$0xff]
  %v29 = vld [vmem:[%s2 + $0x18] sm:$0xff]
  %v30 = vunpack.c.l.s8.bf16 %v26
  %v31 = vunpack.c.h.s8.bf16 %v26
  %v32 = vunpack.c.l.s8.bf16 %v27
  %v33 = vunpack.c.h.s8.bf16 %v27
  %v34 = vunpack.c.l.s8.bf16 %v28
  %v35 = vunpack.c.h.s8.bf16 %v28
  %v36 = vunpack.c.l.s8.bf16 %v29
  %v37 = vunpack.c.h.s8.bf16 %v29
  %38 = vmatprep.subr.bf16.mxu0 0
  %39 = vmatpush1.bf16.msra.mxu0 %v30
  %40 = vmatprep.subr.bf16.mxu0 0
  %41 = vmatpush1.bf16.msra.mxu0 %v31
  %42 = vmatprep.subr.bf16.mxu0 0
  %43 = vmatpush1.bf16.msra.mxu0 %v32
  %44 = vmatprep.subr.bf16.mxu0 0
  %45 = vmatpush1.bf16.msra.mxu0 %v33
  %46 = vmatprep.subr.bf16.mxu0 0
  %47 = vmatpush1.bf16.msra.mxu0 %v34
  %48 = vmatprep.subr.bf16.mxu0 0
  %49 = vmatpush1.bf16.msra.mxu0 %v35
  %50 = vmatprep.subr.bf16.mxu0 0
  %51 = vmatpush1.bf16.msra.mxu0 %v36
  %52 = vmatprep.subr.bf16.mxu0 0
  %53 = vmatpush1.bf16.msra.mxu0 %v37
  %54 = vmatprep.subr.bf16.mxu0 0
  %55 = vmatpush1.bf16.msra.mxu0 0
  %56 = vmatprep.subr.bf16.mxu0 0
  %57 = vmatpush1.bf16.msra.mxu0 0
  %58 = vmatprep.subr.bf16.mxu0 0
  %59 = vmatpush1.bf16.msra.mxu0 0
  %60 = vmatprep.subr.bf16.mxu0 0
  %61 = vmatpush1.bf16.msra.mxu0 0
  %62 = vmatprep.subr.bf16.mxu0 0
  %63 = vmatpush1.bf16.msra.mxu0 0
  %64 = vmatprep.subr.bf16.mxu0 0
  %65 = vmatpush1.bf16.msra.mxu0 0
  %66 = vmatprep.subr.bf16.mxu0 0
  %67 = vmatpush1.bf16.msra.mxu0 0
  %68 = vmatprep.subr.bf16.mxu0 0
  %69 = vmatpush1.bf16.msra.mxu0 0
  %70 = vmatprep.mubr.bf16.mxu0 0
  %71 = vmatmul.mubr.bf16.gmra.mrb[0].mxu0 %v25
  %v72 = vpop.f32.mrb[0].mxu0
  %v73 = vadd.f32 0.0, %v72
  %v74 = vpop.f32.mrb[0].mxu0
  %v75 = vpop.f32.mrb[0].mxu0
  %v76 = vpop.f32.mrb[0].mxu0
  %77 = vdwg.mxu0
  %v78 = vadd.f32 %v24, %v73
  %79 = vst [vmem:[%s4] sm:$0xff] %v78
  // Predicated region
  $region22: #{dynq_linear.1} parent=0 // pred_check
    %p80 = pneg %p19
  $region23: #{dynq_linear.1} parent=0 // pred_check_branch
    %82 = sbr.rel (%p80) target = $region25
  $region24: #{dynq_linear.1} parent=0 // pred_region
    %v83 = vld [vmem:[%s4] sm:$0xff]
    %s84 = sld [smem:[#allocation2]]
    %v85 = vstv %s84
    %v86 = vmul.f32 %v83, %v85
    %v87 = vld [vmem:[%s3] sm:$0x1]
    %v89 = vlaneseq
    %v90 = vshrl.u32 %v89, 7
    %v91 = vsub.s32 0, %v90
    %v92 = vrot.slane %v87, %v91
    %v94 = vadd.f32 %v86, %v92
    %95 = vst [vmem:[%s4] sm:$0xff] %v94
  $region25: #{dynq_linear.1} parent=0 // pred_fallthru
    _
  // Predicated region
  $region26: #{dynq_linear.1} parent=0 // pred_check
    _
  $region27: #{dynq_linear.1} parent=0 // pred_check_branch
    %97 = sbr.rel (0) target = $region29
  $region28: #{dynq_linear.1} parent=0 // pred_region
    _
  $region29: #{dynq_linear.1} parent=0 // pred_fallthru
    _
  // Predicated region
  $region30: #{dynq_linear.1} parent=0 // pred_check
    _
  $region31: #{dynq_linear.1} parent=0 // pred_check_branch
    %99 = sbr.rel (0) target = $region33
  $region32: #{dynq_linear.1} parent=0 // pred_region
    _
  $region33: #{dynq_linear.1} parent=0 // pred_fallthru
    _

</llo_original>
